<compile_context>
chip_gen: v7x
topology: tpu7x:2x2x1
jax: 0.10.0
libtpu: 0.0.40
codegen_flags: <defaults>
</compile_context>

<pallas_src>
import jax
import jax.numpy as jnp
from jax.experimental import pallas as pl
from jax.experimental.pallas import tpu as pltpu

BN_EPS = 1e-5


def sampadding_conv1d_bn(x, weight, bias, gamma, beta, *, max_tile_l=2048):
    """SAME-padded Conv1d + training-mode BatchNorm1d.

    x: (N, C_in, L); weight: (C_out, C_in, K); bias/gamma/beta: (C_out,)
    returns (N, C_out, L) in x.dtype.

    The conv bias is accepted for interface parity but unused: it is cancelled
    exactly by the BatchNorm mean subtraction, so the forward output is identical.
    """
    # TODO(synk): BatchNorm running_mean/running_var buffer updates (stateful
    # training side effect) are not reproduced; only the forward output is computed.
    del bias
    N, C_in, L = x.shape
    C_out, _, K = weight.shape
    pad_l, pad_r = (K - 1) // 2, K // 2

    # ---- L tiling: one lane-dense tile per sample if it fits, else 128-mult tiles.
    if L <= max_tile_l:
        tile_l, n_lt, L_pad = L, 1, L
    else:
        tile_l = max_tile_l                         # multiple of 128
        n_lt = -(-L // tile_l)
        L_pad = n_lt * tile_l

    Lh = L_pad + K - 1                              # per-sample halo length
    # SAME padding (+ right pad up to the tile grid): only K-1 (+ tail) extra
    # columns, done once -- no K-times im2col expansion in XLA.
    x_pad = jnp.pad(x.astype(jnp.float32),
                    ((0, 0), (0, 0), (pad_l, pad_r + (L_pad - L))))
    # weight as (K, C_out, C_in): one resident (C_out, C_in) MXU operand per tap.
    w = jnp.transpose(weight.astype(jnp.float32), (2, 0, 1))

    # Explicit scoped-VMEM limit: per-step footprint (resident w + double-buffered
    # x-sample block + out/stats block + f32 acc) is small at these tiles, but the
    # default scoped limit is 16 MiB on v5e / 32 MiB on v6e-v7x.
    est = 4 * (K * C_out * C_in + 2 * C_in * Lh + 4 * C_out * tile_l + 4 * C_out)
    vmem_bytes = int(min(max(2 * est, 32 * 1024 * 1024), 64 * 1024 * 1024))
    cparams = pltpu.CompilerParams(
        dimension_semantics=("parallel", "parallel"),   # megacore-friendly (v7x)
        vmem_limit_bytes=vmem_bytes)

    def tile_base():
        if n_lt == 1:
            return 0                                 # fully static slicing
        return pl.multiple_of(pl.program_id(1) * tile_l, 128)

    def conv_tile(w_ref, x_ref, base):
        """(C_out, tile_l) f32 conv output for output columns [base, base+tile_l)."""
        acc = None
        for k in range(K):                           # static unroll over taps
            xk = x_ref[0, :, pl.ds(base + k, tile_l)]          # (C_in, tile_l)
            d = jnp.dot(w_ref[k], xk, preferred_element_type=jnp.float32)
            acc = d if acc is None else acc + d
        return acc

    # ------------- pass 1: per-(sample, L-tile) partial BN statistics -------------
    def stats_kernel(w_ref, x_ref, st_ref):
        base = tile_base()
        y = conv_tile(w_ref, x_ref, base)
        if L_pad != L:                               # mask tail-padded columns
            lane = jax.lax.broadcasted_iota(jnp.int32, (C_out, tile_l), 1)
            y = jnp.where(base + lane < L, y, 0.0)
        st_ref[0, 0] = jnp.concatenate(
            [jnp.sum(y, axis=1, keepdims=True),
             jnp.sum(y * y, axis=1, keepdims=True)], axis=1)   # (C_out, 2)

    stats = pl.pallas_call(
        stats_kernel,
        grid=(N, n_lt),
        in_specs=[
            pl.BlockSpec((K, C_out, C_in), lambda n, j: (0, 0, 0)),
            pl.BlockSpec((1, C_in, Lh), lambda n, j: (n, 0, 0)),
        ],
        out_specs=pl.BlockSpec((1, 1, C_out, 2), lambda n, j: (n, j, 0, 0)),
        out_shape=jax.ShapeDtypeStruct((N, n_lt, C_out, 2), jnp.float32),
        compiler_params=cparams,
    )(w, x_pad)

    # ---- tiny XLA finalize over the per-tile partials (C_out scalars only) -------
    nl = float(N * L)
    s = jnp.sum(stats[..., 0], axis=(0, 1))           # (C_out,)
    ss = jnp.sum(stats[..., 1], axis=(0, 1))
    mean = s / nl
    var = jnp.maximum(ss / nl - mean * mean, 0.0)      # biased var (PyTorch train BN)
    inv_std = jax.lax.rsqrt(var + BN_EPS)
    g = gamma.astype(jnp.float32)
    scale = (g * inv_std).reshape(C_out, 1)
    shift = (beta.astype(jnp.float32) - mean * g * inv_std).reshape(C_out, 1)

    # ------------- pass 2: recompute conv + fused BN, write NCL output ------------
    def apply_kernel(w_ref, sc_ref, sh_ref, x_ref, o_ref):
        base = tile_base()
        y = conv_tile(w_ref, x_ref, base)
        o_ref[0] = (y * sc_ref[...] + sh_ref[...]).astype(o_ref.dtype)

    out = pl.pallas_call(
        apply_kernel,
        grid=(N, n_lt),
        in_specs=[
            pl.BlockSpec((K, C_out, C_in), lambda n, j: (0, 0, 0)),
            pl.BlockSpec((C_out, 1), lambda n, j: (0, 0)),
            pl.BlockSpec((C_out, 1), lambda n, j: (0, 0)),
            pl.BlockSpec((1, C_in, Lh), lambda n, j: (n, 0, 0)),
        ],
        out_specs=pl.BlockSpec((1, C_out, tile_l), lambda n, j: (n, 0, j)),
        out_shape=jax.ShapeDtypeStruct((N, C_out, L_pad), x.dtype),
        compiler_params=cparams,
    )(w, scale, shift, x_pad)

    return out if L_pad == L else out[:, :, :L]


def _reference(x, weight, bias, gamma, beta):
    """Pure-JAX reference matching PyTorch semantics (training-mode BN)."""
    C_out, _, K = weight.shape
    pad_left = (K - 1) // 2
    pad_right = K // 2
    x_pad = jnp.pad(x, ((0, 0), (0, 0), (pad_left, pad_right)))
    y = jax.lax.conv_general_dilated(
        x_pad, weight, window_strides=(1,), padding='VALID',
        dimension_numbers=('NCH', 'OIH', 'NCH'))
    y = y + bias[None, :, None]
    mean = jnp.mean(y, axis=(0, 2), keepdims=True)
    var = jnp.mean((y - mean) ** 2, axis=(0, 2), keepdims=True)
    return gamma[None, :, None] * (y - mean) / jnp.sqrt(var + BN_EPS) \
        + beta[None, :, None]


if __name__ == "__main__":
    # Small shapes consistent with the module's forward: x is (N, C_in, L).
    N, C_IN, C_OUT, L, K = 2, 4, 8, 16, 3

    key = jax.random.PRNGKey(0)
    kx, kw, kb = jax.random.split(key, 3)

    x = jax.random.normal(kx, (N, C_IN, L), dtype=jnp.float32)

    # Deterministic parameter init (synthetic, PyTorch shapes):
    # Conv1d: weight (C_out, C_in, K), bias (C_out,); BatchNorm1d: weight=1, bias=0.
    bound = 1.0 / (C_IN * K) ** 0.5
    weight = jax.random.uniform(kw, (C_OUT, C_IN, K), jnp.float32, -bound, bound)
    bias = jax.random.uniform(kb, (C_OUT,), jnp.float32, -bound, bound)
    gamma = jnp.ones((C_OUT,), jnp.float32)
    beta = jnp.zeros((C_OUT,), jnp.float32)

    out = sampadding_conv1d_bn(x, weight, bias, gamma, beta)
    out = jax.block_until_ready(out)

    ref = _reference(x, weight, bias, gamma, beta)
    assert out.shape == (N, C_OUT, L)
    max_err = float(jnp.max(jnp.abs(out - ref)))
    assert jnp.allclose(out, ref, atol=1e-4, rtol=1e-4), f"max abs err {max_err}"

    print("KERNEL_OK")
</pallas_src>

<mosaic_0001>
module attributes {stable_mosaic.version = 11 : i64} {
  func.func @stats_kernel(%arg0: i32, %arg1: i32, %arg2: memref<3x8x4xf32, #tpu.memory_space<vmem>>, %arg3: memref<1x4x18xf32, #tpu.memory_space<vmem>>, %arg4: memref<1x1x8x2xf32, #tpu.memory_space<vmem>>) attributes {dimension_semantics = [#tpu.dimension_semantics<parallel>, #tpu.dimension_semantics<parallel>], iteration_bounds = array<i64: 2, 1>, scalar_prefetch = 0 : i64, scratch_operands = 0 : i64, tpu.core_type = #tpu.core_type<tc>, window_params = [{pipeline_mode = #tpu.pipeline_mode<synchronous>, transform_indices = @transform_0, window_bounds = array<i64: 3, 8, 4>}, {transform_indices = @transform_1, window_bounds = array<i64: 1, 4, 18>}, {transform_indices = @transform_2, window_bounds = array<i64: 1, 1, 8, 2>}]} {
    %c0 = arith.constant 0 : index
    %c0_0 = arith.constant 0 : index
    %c0_1 = arith.constant 0 : index
    %0 = vector.load %arg3[%c0, %c0_0, %c0_1] : memref<1x4x18xf32, #tpu.memory_space<vmem>>, vector<1x4x16xf32>
    %1 = vector.shape_cast %0 : vector<1x4x16xf32> to vector<4x16xf32>
    %c0_2 = arith.constant 0 : index
    %c0_3 = arith.constant 0 : index
    %c0_4 = arith.constant 0 : index
    %2 = vector.load %arg2[%c0_2, %c0_3, %c0_4] : memref<3x8x4xf32, #tpu.memory_space<vmem>>, vector<1x8x4xf32>
    %3 = vector.shape_cast %2 : vector<1x8x4xf32> to vector<8x4xf32>
    %cst = arith.constant dense<0.000000e+00> : vector<8x16xf32>
    %4 = tpu.matmul %3, %1, %cst {dimension_numbers = #tpu.dot_dimension_numbers<[1], [0], [0], [1], [0, 0, 1, 1], [], []>} : vector<8x4xf32>, vector<4x16xf32>, vector<8x16xf32> -> vector<8x16xf32>
    %c0_5 = arith.constant 0 : index
    %c0_6 = arith.constant 0 : index
    %c1 = arith.constant 1 : index
    %5 = vector.load %arg3[%c0_5, %c0_6, %c1] : memref<1x4x18xf32, #tpu.memory_space<vmem>>, vector<1x4x16xf32>
    %6 = vector.shape_cast %5 : vector<1x4x16xf32> to vector<4x16xf32>
    %c1_7 = arith.constant 1 : index
    %c0_8 = arith.constant 0 : index
    %c0_9 = arith.constant 0 : index
    %7 = vector.load %arg2[%c1_7, %c0_8, %c0_9] : memref<3x8x4xf32, #tpu.memory_space<vmem>>, vector<1x8x4xf32>
    %8 = vector.shape_cast %7 : vector<1x8x4xf32> to vector<8x4xf32>
    %cst_10 = arith.constant dense<0.000000e+00> : vector<8x16xf32>
    %9 = tpu.matmul %8, %6, %cst_10 {dimension_numbers = #tpu.dot_dimension_numbers<[1], [0], [0], [1], [0, 0, 1, 1], [], []>} : vector<8x4xf32>, vector<4x16xf32>, vector<8x16xf32> -> vector<8x16xf32>
    %10 = arith.addf %4, %9 : vector<8x16xf32>
    %c0_11 = arith.constant 0 : index
    %c0_12 = arith.constant 0 : index
    %c2 = arith.constant 2 : index
    %11 = vector.load %arg3[%c0_11, %c0_12, %c2] : memref<1x4x18xf32, #tpu.memory_space<vmem>>, vector<1x4x16xf32>
    %12 = vector.shape_cast %11 : vector<1x4x16xf32> to vector<4x16xf32>
    %c2_13 = arith.constant 2 : index
    %c0_14 = arith.constant 0 : index
    %c0_15 = arith.constant 0 : index
    %13 = vector.load %arg2[%c2_13, %c0_14, %c0_15] : memref<3x8x4xf32, #tpu.memory_space<vmem>>, vector<1x8x4xf32>
    %14 = vector.shape_cast %13 : vector<1x8x4xf32> to vector<8x4xf32>
    %cst_16 = arith.constant dense<0.000000e+00> : vector<8x16xf32>
    %15 = tpu.matmul %14, %12, %cst_16 {dimension_numbers = #tpu.dot_dimension_numbers<[1], [0], [0], [1], [0, 0, 1, 1], [], []>} : vector<8x4xf32>, vector<4x16xf32>, vector<8x16xf32> -> vector<8x16xf32>
    %16 = arith.addf %10, %15 : vector<8x16xf32>
    %cst_17 = arith.constant dense<0.000000e+00> : vector<8xf32>
    %17 = vector.multi_reduction <add>, %16, %cst_17 [1] : vector<8x16xf32> to vector<8xf32>
    %18 = vector.shape_cast %17 : vector<8xf32> to vector<8x1xf32>
    %19 = arith.mulf %16, %16 : vector<8x16xf32>
    %cst_18 = arith.constant dense<0.000000e+00> : vector<8xf32>
    %20 = vector.multi_reduction <add>, %19, %cst_18 [1] : vector<8x16xf32> to vector<8xf32>
    %21 = vector.shape_cast %20 : vector<8xf32> to vector<8x1xf32>
    %22 = tpu.concatenate %18, %21 in 1 : vector<8x1xf32>, vector<8x1xf32> -> vector<8x2xf32>
    %c0_19 = arith.constant 0 : index
    %c0_20 = arith.constant 0 : index
    %c0_21 = arith.constant 0 : index
    %c0_22 = arith.constant 0 : index
    %23 = vector.load %arg4[%c0_19, %c0_20, %c0_21, %c0_22] : memref<1x1x8x2xf32, #tpu.memory_space<vmem>>, vector<1x1x8x2xf32>
    %24 = vector.shape_cast %23 : vector<1x1x8x2xf32> to vector<8x2xf32>
    %25 = vector.shape_cast %22 : vector<8x2xf32> to vector<1x1x8x2xf32>
    tpu.vector_store %arg4[%c0_19, %c0_20, %c0_21, %c0_22], %25 {strides = array<i32>} : memref<1x1x8x2xf32, #tpu.memory_space<vmem>>, vector<1x1x8x2xf32>,
    return
  }
  func.func @transform_0(%arg0: i32, %arg1: i32) -> (i32, i32, i32) {
    %c0_i32 = arith.constant 0 : i32
    %c0_i32_0 = arith.constant 0 : i32
    %c0_i32_1 = arith.constant 0 : i32
    %c0_i32_2 = arith.constant 0 : i32
    return %c0_i32, %c0_i32_0, %c0_i32_1 : i32, i32, i32
  }
  func.func @transform_1(%arg0: i32, %arg1: i32) -> (i32, i32, i32) {
    %c0_i32 = arith.constant 0 : i32
    %c0_i32_0 = arith.constant 0 : i32
    %c0_i32_1 = arith.constant 0 : i32
    return %arg0, %c0_i32, %c0_i32_0 : i32, i32, i32
  }
  func.func @transform_2(%arg0: i32, %arg1: i32) -> (i32, i32, i32, i32) {
    %c0_i32 = arith.constant 0 : i32
    %c0_i32_0 = arith.constant 0 : i32
    %c0_i32_1 = arith.constant 0 : i32
    return %arg0, %arg1, %c0_i32, %c0_i32_0 : i32, i32, i32, i32
  }
}

</mosaic_0001>

<llo_original>
// kernel: tpu_custom_call.1
$region0: #{tpu_custom_call.1}
  #allocation0 [shape = 'u32[]', space=smem, size = 0x4, offset = 0x4, fixed_abs, tag = 'smem constant byte address 0x4 - core index']
  #allocation1 [shape = 'u32[144,128]{1,0:T(1,128)}', space=vmem, size = 0x12000, scoped, tag = 'internal scratch']
  %s0 = inlined_call_operand.vmem [shape: f32[3,8,4], index: 0, kind: input, shape index: {}]
  %s1 = inlined_call_operand.vmem [shape: f32[2,4,18], index: 1, kind: input, shape index: {}]
  %s2 = inlined_call_operand.vmem [shape: f32[2,1,8,2], index: 2, kind: output, shape index: {}]
  %s3 = sld [smem:[#allocation0]]
  $region41: #{tpu_custom_call.1} parent=0
    _
  %s5 = ssub.s32 1, %s3
  %s6 = scalar_select 0, %s5, %s3
  loop: start=0, step=1, limit=4
  $region2: #{tpu_custom_call.1} parent=0 // loop_pre_header
    _
  $region3: #{tpu_custom_call.1} parent=0 // loop_header
    %s8 = sphi 0, %s12
    %p9 = scmp.ge.s32.totalorder %s8, 4
    %s15 = sphi 0, %s27
    %s16 = sphi 0, %s23
    %s17 = sphi 0, %s15
    %s18 = sphi 0, %s16
    %s19 = sphi 0, %s17
    %s20 = sphi 0, %s18
    %s28 = sphi 0, %s28
    %s30 = sphi 0, %s28
    %s31 = sphi 0, %s30
    %s45 = sphi 0, %s31
    %s51 = sphi 0, %s53
    %s54 = sphi 0, %s51
    %s55 = sphi 0, %s54
    %s71 = sphi 0, %s55
    %s79 = sphi 0, %s81
    %s82 = sphi 0, %s79
    %s83 = sphi 0, %s82
    %s99 = sphi 0, %s83
  $region4: #{tpu_custom_call.1} parent=0 // loop_header_branch
    %11 = sbr.rel (%p9) target = $region8
  $region5: #{tpu_custom_call.1} parent=0 // loop_body
    %s13 = ssub.s32 %s8, 1
    %s14 = ssub.s32 %s8, 2
    %s21 = sadd.s32 1, %s16
    %p22 = scmp.ge.s32.totalorder %s21, 1
    %s23 = scalar_select %p22, 0, %s21
    %s24 = sadd.s32 1, %s15
    %s25 = scalar_select %p22, %s24, %s15
    %p26 = scmp.ge.s32.totalorder %s25, 2
    %s27 = scalar_select %p26, 0, %s25
    %s29 = sadd.s32 %s28, 1
    %p32 = scmp.eq.s32.totalorder %s8, 1
    %p33 = scmp.ne.s32.totalorder %s28, %s30
    %p34 = scmp.eq.s32.totalorder %s8, 0
    %p35 = por %p33, %p34
    %p36 = scmp.ne.s32.totalorder %s28, %s30
    %p37 = scmp.eq.s32.totalorder %s13, 1
    %p38 = por %p36, %p37
    %p39 = scmp.ne.s32.totalorder %s30, %s31
    %p40 = scmp.eq.s32.totalorder %s13, 0
    %p41 = por %p39, %p40
    %p42 = scmp.ne.s32.totalorder %s30, %s31
    %p43 = scmp.eq.s32.totalorder %s14, 1
    %p44 = por %p42, %p43
    %p46 = scmp.ne.s32.totalorder %s31, %s45
    %p47 = scmp.eq.s32.totalorder %s14, 0
    %p48 = por %p46, %p47
    %s49 = ssub.s32 %s15, %s27
    %p50 = scmp.eq.s32.totalorder %s49, 0
    %s52 = sadd.s32 %s51, 1
    %s53 = scalar_select %p50, %s51, %s52
    %p56 = pneg %p50
    %p57 = scmp.eq.s32.totalorder %s8, 1
    %p58 = por %p56, %p57
    %p59 = scmp.ne.s32.totalorder %s51, %s54
    %p60 = scmp.eq.s32.totalorder %s8, 0
    %p61 = por %p59, %p60
    %p62 = scmp.ne.s32.totalorder %s51, %s54
    %p63 = scmp.eq.s32.totalorder %s13, 1
    %p64 = por %p62, %p63
    %p65 = scmp.ne.s32.totalorder %s54, %s55
    %p66 = scmp.eq.s32.totalorder %s13, 0
    %p67 = por %p65, %p66
    %p68 = scmp.ne.s32.totalorder %s54, %s55
    %p69 = scmp.eq.s32.totalorder %s14, 1
    %p70 = por %p68, %p69
    %p72 = scmp.ne.s32.totalorder %s55, %s71
    %p73 = scmp.eq.s32.totalorder %s14, 0
    %p74 = por %p72, %p73
    %s75 = ssub.s32 %s15, %s27
    %s76 = ssub.s32 %s16, %s23
    %s77 = sor.u32 %s75, %s76
    %p78 = scmp.eq.s32.totalorder %s77, 0
    %s80 = sadd.s32 %s79, 1
    %s81 = scalar_select %p78, %s79, %s80
    %p84 = pneg %p78
    %p85 = scmp.eq.s32.totalorder %s8, 1
    %p86 = por %p84, %p85
    %p87 = scmp.ne.s32.totalorder %s79, %s82
    %p88 = scmp.eq.s32.totalorder %s8, 0
    %p89 = por %p87, %p88
    %p90 = scmp.ne.s32.totalorder %s79, %s82
    %p91 = scmp.eq.s32.totalorder %s13, 1
    %p92 = por %p90, %p91
    %p93 = scmp.ne.s32.totalorder %s82, %s83
    %p94 = scmp.eq.s32.totalorder %s13, 0
    %p95 = por %p93, %p94
    %p96 = scmp.ne.s32.totalorder %s82, %s83
    %p97 = scmp.eq.s32.totalorder %s14, 1
    %p98 = por %p96, %p97
    %p100 = scmp.ne.s32.totalorder %s83, %s99
    %p101 = scmp.eq.s32.totalorder %s14, 0
    %p102 = por %p100, %p101
    %p103 = scmp.le.s32.totalorder 1, %s8
    %p104 = scmp.lt.s32.totalorder %s8, 3
    %p105 = pnand %p103, %p104
    %p106 = pneg %p105
    // Predicated region
    $region9: #{tpu_custom_call.1} parent=5 // pred_check
      _
    $region10: #{tpu_custom_call.1} parent=5 // pred_check_branch
      %108 = sbr.rel (%p105) target = $region12
    $region11: #{tpu_custom_call.1} parent=5 // pred_region
      %s109 = ssub.s32 %s8, 1
      // Predicated region
      $region13: #{tpu_custom_call.1} parent=11 // pred_check
        %p110 = pneg %p41
      $region14: #{tpu_custom_call.1} parent=11 // pred_check_branch
        %112 = sbr.rel (%p110) target = $region16
      $region15: #{tpu_custom_call.1} parent=11 // pred_region
        _
      $region16: #{tpu_custom_call.1} parent=11 // pred_fallthru
        _
    $region12: #{tpu_custom_call.1} parent=5 // pred_fallthru
      _
    %p113 = scmp.lt.s32.totalorder %s8, 2
    // Predicated region
    $region17: #{tpu_custom_call.1} parent=5 // pred_check
      %p114 = pneg %p113
    $region18: #{tpu_custom_call.1} parent=5 // pred_check_branch
      %116 = sbr.rel (%p114) target = $region20
    $region19: #{tpu_custom_call.1} parent=5 // pred_region
      // Predicated region
      $region21: #{tpu_custom_call.1} parent=19 // pred_check
        %p117 = pneg %p61
      $region22: #{tpu_custom_call.1} parent=19 // pred_check_branch
        %119 = sbr.rel (%p117) target = $region24
      $region23: #{tpu_custom_call.1} parent=19 // pred_region
        %p120 = scmp.lt.s32.totalorder %s15, 1
        %s121 = scalar_select %p120, %s15, 1
        %s122 = smul.addr %s121, 4
        %s123 = scalar_lea.vmem %s1, %s122
      $region24: #{tpu_custom_call.1} parent=19 // pred_fallthru
        _
    $region20: #{tpu_custom_call.1} parent=5 // pred_fallthru
      _
    %p124 = scmp.le.s32.totalorder 1, %s8
    %p125 = scmp.lt.s32.totalorder %s8, 3
    %p126 = pnand %p124, %p125
    %p127 = pneg %p126
    // Predicated region
    $region25: #{tpu_custom_call.1} parent=5 // pred_check
      _
    $region26: #{tpu_custom_call.1} parent=5 // pred_check_branch
      %129 = sbr.rel (%p126) target = $region28
    $region27: #{tpu_custom_call.1} parent=5 // pred_region
      %s130 = ssub.s32 %s8, 1
      %p131 = pneg %p41
      %p132 = pneg %p38
      %p133 = scmp.lt.s32.totalorder %s17, 1
      %s134 = scalar_select %p133, %s17, 1
      %s135 = smul.addr %s134, 4
      %s136 = scalar_lea.vmem %s1, %s135
      %p137 = pneg %p67
      %p138 = pneg %p64
      %p139 = pneg %p95
      %p140 = pneg %p92
      %p141 = scmp.lt.s32.totalorder %s17, 1
      %s142 = scalar_select %p141, %s17, 1
      %p143 = scmp.lt.s32.totalorder %s18, 0
      %s144 = scalar_select %p143, %s18, 0
      %s145 = sadd.s32 %s144, %s142
      %s146 = smul.addr %s145, 8
      %s147 = scalar_lea.vmem %s2, %s146
      %p148 = scmp.lt.s32.totalorder %s17, 1
      %s149 = scalar_select %p148, %s17, 1
      %s150 = smul.addr %s149, 4
      %s151 = scalar_lea.vmem %s1, %s150
      %p152 = scmp.lt.s32.totalorder %s17, 1
      %s153 = scalar_select %p152, %s17, 1
      %p154 = scmp.lt.s32.totalorder %s18, 0
      %s155 = scalar_select %p154, %s18, 0
      %s156 = sadd.s32 %s155, %s153
      %s157 = smul.addr %s156, 8
      %s158 = scalar_lea.vmem %s2, %s157
      %v159 = vld [vmem:[%s151] sm:$0xf]
      %v160 = vld [vmem:[%s0] sm:$0xff]
      %s161 = scalar_lea.vmem %s0, 8
      %v162 = vld [vmem:[%s161] sm:$0xff]
      %164 = vrot.lane.b32.xlu0 %v159, 127
      %v165 = vpop.permute.xlu0 %164
      %vm166 = vcmask 31744
      %v168 = vsel %vm166, %v162, 0
      %vm170 = vcmask 1043456
      %v171 = vsel %vm170, %v165, 0
      %173 = vmatprep.subr.mxu0 0.0
      %174 = vmatpush1.msra.mxu0 %v171
      %175 = vmatprep.subr.mxu0 0.0
      %176 = vmatpush1.msra.mxu0 0.0
      %177 = vmatprep.subr.mxu0 0.0
      %178 = vmatpush1.msra.mxu0 0.0
      %179 = vmatprep.subr.mxu0 0.0
      %180 = vmatpush1.msra.mxu0 0.0
      %181 = vmatprep.subr.mxu0 0.0
      %182 = vmatpush1.msra.mxu0 0.0
      %183 = vmatprep.subr.mxu0 0.0
      %184 = vmatpush1.msra.mxu0 0.0
      %185 = vmatprep.subr.mxu0 0.0
      %186 = vmatpush1.msra.mxu0 0.0
      %187 = vmatprep.subr.mxu0 0.0
      %188 = vmatpush1.msra.mxu0 0.0
      %189 = vmatprep.subr.mxu0 0.0
      %190 = vmatpush1.msra.mxu0 0.0
      %191 = vmatprep.subr.mxu0 0.0
      %192 = vmatpush1.msra.mxu0 0.0
      %193 = vmatprep.subr.mxu0 0.0
      %194 = vmatpush1.msra.mxu0 0.0
      %195 = vmatprep.subr.mxu0 0.0
      %196 = vmatpush1.msra.mxu0 0.0
      %197 = vmatprep.subr.mxu0 0.0
      %198 = vmatpush1.msra.mxu0 0.0
      %199 = vmatprep.subr.mxu0 0.0
      %200 = vmatpush1.msra.mxu0 0.0
      %201 = vmatprep.subr.mxu0 0.0
      %202 = vmatpush1.msra.mxu0 0.0
      %203 = vmatprep.subr.mxu0 0.0
      %204 = vmatpush1.msra.mxu0 0.0
      %205 = vmatprep.subr.mxu0 0.0
      %206 = vmatpush1.msra.mxu0 0.0
      %207 = vmatprep.subr.mxu0 0.0
      %208 = vmatpush1.msra.mxu0 0.0
      %209 = vmatprep.subr.mxu0 0.0
      %210 = vmatpush1.msra.mxu0 0.0
      %211 = vmatprep.subr.mxu0 0.0
      %212 = vmatpush1.msra.mxu0 0.0
      %213 = vmatprep.subr.mxu0 0.0
      %214 = vmatpush1.msra.mxu0 0.0
      %215 = vmatprep.subr.mxu0 0.0
      %216 = vmatpush1.msra.mxu0 0.0
      %217 = vmatprep.subr.mxu0 0.0
      %218 = vmatpush1.msra.mxu0 0.0
      %219 = vmatprep.subr.mxu0 0.0
      %220 = vmatpush1.msra.mxu0 0.0
      %221 = vmatprep.subr.mxu0 0.0
      %222 = vmatpush1.msra.mxu0 0.0
      %223 = vmatprep.subr.mxu0 0.0
      %224 = vmatpush1.msra.mxu0 0.0
      %225 = vmatprep.subr.mxu0 0.0
      %226 = vmatpush1.msra.mxu0 0.0
      %227 = vmatprep.subr.mxu0 0.0
      %228 = vmatpush1.msra.mxu0 0.0
      %229 = vmatprep.subr.mxu0 0.0
      %230 = vmatpush1.msra.mxu0 0.0
      %231 = vmatprep.subr.mxu0 0.0
      %232 = vmatpush1.msra.mxu0 0.0
      %233 = vmatprep.subr.mxu0 0.0
      %234 = vmatpush1.msra.mxu0 0.0
      %235 = vmatprep.subr.mxu0 0.0
      %236 = vmatpush1.msra.mxu0 0.0
      %237 = vmatprep.mubr.f32.mxu0 0.0
      %238 = vmatmul.mubr.f32.gmra.mrb[0].mxu0 %v168
      %v239 = vpop.f32.mrb[0].mxu0
      %v240 = vadd.f32 0.0, %v239
      %v241 = vpop.f32.mrb[0].mxu0
      %242 = vdwg.mxu0
      %v244 = vsel %vm166, %v160, 0
      %v246 = vsel %vm170, %v159, 0
      %248 = vmatprep.subr.mxu0 0.0
      %249 = vmatpush1.msra.mxu0 %v246
      %250 = vmatprep.subr.mxu0 0.0
      %251 = vmatpush1.msra.mxu0 0.0
      %252 = vmatprep.subr.mxu0 0.0
      %253 = vmatpush1.msra.mxu0 0.0
      %254 = vmatprep.subr.mxu0 0.0
      %255 = vmatpush1.msra.mxu0 0.0
      %256 = vmatprep.subr.mxu0 0.0
      %257 = vmatpush1.msra.mxu0 0.0
      %258 = vmatprep.subr.mxu0 0.0
      %259 = vmatpush1.msra.mxu0 0.0
      %260 = vmatprep.subr.mxu0 0.0
      %261 = vmatpush1.msra.mxu0 0.0
      %262 = vmatprep.subr.mxu0 0.0
      %263 = vmatpush1.msra.mxu0 0.0
      %264 = vmatprep.subr.mxu0 0.0
      %265 = vmatpush1.msra.mxu0 0.0
      %266 = vmatprep.subr.mxu0 0.0
      %267 = vmatpush1.msra.mxu0 0.0
      %268 = vmatprep.subr.mxu0 0.0
      %269 = vmatpush1.msra.mxu0 0.0
      %270 = vmatprep.subr.mxu0 0.0
      %271 = vmatpush1.msra.mxu0 0.0
      %272 = vmatprep.subr.mxu0 0.0
      %273 = vmatpush1.msra.mxu0 0.0
      %274 = vmatprep.subr.mxu0 0.0
      %275 = vmatpush1.msra.mxu0 0.0
      %276 = vmatprep.subr.mxu0 0.0
      %277 = vmatpush1.msra.mxu0 0.0
      %278 = vmatprep.subr.mxu0 0.0
      %279 = vmatpush1.msra.mxu0 0.0
      %280 = vmatprep.subr.mxu0 0.0
      %281 = vmatpush1.msra.mxu0 0.0
      %282 = vmatprep.subr.mxu0 0.0
      %283 = vmatpush1.msra.mxu0 0.0
      %284 = vmatprep.subr.mxu0 0.0
      %285 = vmatpush1.msra.mxu0 0.0
      %286 = vmatprep.subr.mxu0 0.0
      %287 = vmatpush1.msra.mxu0 0.0
      %288 = vmatprep.subr.mxu0 0.0
      %289 = vmatpush1.msra.mxu0 0.0
      %290 = vmatprep.subr.mxu0 0.0
      %291 = vmatpush1.msra.mxu0 0.0
      %292 = vmatprep.subr.mxu0 0.0
      %293 = vmatpush1.msra.mxu0 0.0
      %294 = vmatprep.subr.mxu0 0.0
      %295 = vmatpush1.msra.mxu0 0.0
      %296 = vmatprep.subr.mxu0 0.0
      %297 = vmatpush1.msra.mxu0 0.0
      %298 = vmatprep.subr.mxu0 0.0
      %299 = vmatpush1.msra.mxu0 0.0
      %300 = vmatprep.subr.mxu0 0.0
      %301 = vmatpush1.msra.mxu0 0.0
      %302 = vmatprep.subr.mxu0 0.0
      %303 = vmatpush1.msra.mxu0 0.0
      %304 = vmatprep.subr.mxu0 0.0
      %305 = vmatpush1.msra.mxu0 0.0
      %306 = vmatprep.subr.mxu0 0.0
      %307 = vmatpush1.msra.mxu0 0.0
      %308 = vmatprep.subr.mxu0 0.0
      %309 = vmatpush1.msra.mxu0 0.0
      %310 = vmatprep.subr.mxu0 0.0
      %311 = vmatpush1.msra.mxu0 0.0
      %312 = vmatprep.mubr.f32.mxu0 0.0
      %313 = vmatmul.mubr.f32.gmra.mrb[0].mxu0 %v244
      %v314 = vpop.f32.mrb[0].mxu0
      %v315 = vadd.f32 %v240, %v314
      %v316 = vpop.f32.mrb[0].mxu0
      %317 = vdwg.mxu0
      %s318 = scalar_lea.vmem %s0, 16
      %v319 = vld [vmem:[%s318] sm:$0xff]
      %320 = vrot.lane.b32.xlu0 %v159, 126
      %v321 = vpop.permute.xlu0 %320
      %v323 = vsel %vm166, %v319, 0
      %v325 = vsel %vm170, %v321, 0
      %327 = vmatprep.subr.mxu0 0.0
      %328 = vmatpush1.msra.mxu0 %v325
      %329 = vmatprep.subr.mxu0 0.0
      %330 = vmatpush1.msra.mxu0 0.0
      %331 = vmatprep.subr.mxu0 0.0
      %332 = vmatpush1.msra.mxu0 0.0
      %333 = vmatprep.subr.mxu0 0.0
      %334 = vmatpush1.msra.mxu0 0.0
      %335 = vmatprep.subr.mxu0 0.0
      %336 = vmatpush1.msra.mxu0 0.0
      %337 = vmatprep.subr.mxu0 0.0
      %338 = vmatpush1.msra.mxu0 0.0
      %339 = vmatprep.subr.mxu0 0.0
      %340 = vmatpush1.msra.mxu0 0.0
      %341 = vmatprep.subr.mxu0 0.0
      %342 = vmatpush1.msra.mxu0 0.0
      %343 = vmatprep.subr.mxu0 0.0
      %344 = vmatpush1.msra.mxu0 0.0
      %345 = vmatprep.subr.mxu0 0.0
      %346 = vmatpush1.msra.mxu0 0.0
      %347 = vmatprep.subr.mxu0 0.0
      %348 = vmatpush1.msra.mxu0 0.0
      %349 = vmatprep.subr.mxu0 0.0
      %350 = vmatpush1.msra.mxu0 0.0
      %351 = vmatprep.subr.mxu0 0.0
      %352 = vmatpush1.msra.mxu0 0.0
      %353 = vmatprep.subr.mxu0 0.0
      %354 = vmatpush1.msra.mxu0 0.0
      %355 = vmatprep.subr.mxu0 0.0
      %356 = vmatpush1.msra.mxu0 0.0
      %357 = vmatprep.subr.mxu0 0.0
      %358 = vmatpush1.msra.mxu0 0.0
      %359 = vmatprep.subr.mxu0 0.0
      %360 = vmatpush1.msra.mxu0 0.0
      %361 = vmatprep.subr.mxu0 0.0
      %362 = vmatpush1.msra.mxu0 0.0
      %363 = vmatprep.subr.mxu0 0.0
      %364 = vmatpush1.msra.mxu0 0.0
      %365 = vmatprep.subr.mxu0 0.0
      %366 = vmatpush1.msra.mxu0 0.0
      %367 = vmatprep.subr.mxu0 0.0
      %368 = vmatpush1.msra.mxu0 0.0
      %369 = vmatprep.subr.mxu0 0.0
      %370 = vmatpush1.msra.mxu0 0.0
      %371 = vmatprep.subr.mxu0 0.0
      %372 = vmatpush1.msra.mxu0 0.0
      %373 = vmatprep.subr.mxu0 0.0
      %374 = vmatpush1.msra.mxu0 0.0
      %375 = vmatprep.subr.mxu0 0.0
      %376 = vmatpush1.msra.mxu0 0.0
      %377 = vmatprep.subr.mxu0 0.0
      %378 = vmatpush1.msra.mxu0 0.0
      %379 = vmatprep.subr.mxu0 0.0
      %380 = vmatpush1.msra.mxu0 0.0
      %381 = vmatprep.subr.mxu0 0.0
      %382 = vmatpush1.msra.mxu0 0.0
      %383 = vmatprep.subr.mxu0 0.0
      %384 = vmatpush1.msra.mxu0 0.0
      %385 = vmatprep.subr.mxu0 0.0
      %386 = vmatpush1.msra.mxu0 0.0
      %387 = vmatprep.subr.mxu0 0.0
      %388 = vmatpush1.msra.mxu0 0.0
      %389 = vmatprep.subr.mxu0 0.0
      %390 = vmatpush1.msra.mxu0 0.0
      %391 = vmatprep.mubr.f32.mxu0 0.0
      %392 = vmatmul.mubr.f32.gmra.mrb[0].mxu0 %v323
      %v393 = vpop.f32.mrb[0].mxu0
      %v394 = vadd.f32 0.0, %v393
      %v395 = vpop.f32.mrb[0].mxu0
      %396 = vdwg.mxu0
      %v397 = vadd.f32 %v315, %v394
      %vm398 = vcmask 130048
      %v399 = vsel %vm398, %v397, 0.0
      %400 = vadd.xlane.f32.xlu0 %v399
      %v401 = vpop.xlane.xlu0 %400
      %v402 = vmul.f32 %v397, %v397
      %v403 = vsel %vm398, %v402, 0.0
      %404 = vadd.xlane.f32.xlu0 %v403
      %v405 = vpop.xlane.xlu0 %404
      %vm406 = vcmask 7168
      %v407 = vsel %vm406, %v401, %v405
      %vm408 = vcmask 15360
      %409 = vst.msk [vmem:[%s158] sm:$0xff] %vm408, %v407
      %p410 = scmp.lt.s32.totalorder %s17, 1
      %s411 = scalar_select %p410, %s17, 1
      %p412 = scmp.lt.s32.totalorder %s18, 0
      %s413 = scalar_select %p412, %s18, 0
      %s414 = sadd.s32 %s413, %s411
      %s415 = smul.addr %s414, 8
      %s416 = scalar_lea.vmem %s2, %s415
      // Predicated region
      $region29: #{tpu_custom_call.1} parent=27 // pred_check
        %p417 = pneg %p92
      $region30: #{tpu_custom_call.1} parent=27 // pred_check_branch
        %419 = sbr.rel (%p417) target = $region32
      $region31: #{tpu_custom_call.1} parent=27 // pred_region
        _
      $region32: #{tpu_custom_call.1} parent=27 // pred_fallthru
        _
    $region28: #{tpu_custom_call.1} parent=5 // pred_fallthru
      _
    %p420 = scmp.le.s32.totalorder 2, %s8
    // Predicated region
    $region33: #{tpu_custom_call.1} parent=5 // pred_check
      %p421 = pneg %p420
    $region34: #{tpu_custom_call.1} parent=5 // pred_check_branch
      %423 = sbr.rel (%p421) target = $region36
    $region35: #{tpu_custom_call.1} parent=5 // pred_region
      %s424 = ssub.s32 %s8, 2
      // Predicated region
      $region37: #{tpu_custom_call.1} parent=35 // pred_check
        %p425 = pneg %p98
      $region38: #{tpu_custom_call.1} parent=35 // pred_check_branch
        %427 = sbr.rel (%p425) target = $region40
      $region39: #{tpu_custom_call.1} parent=35 // pred_region
        %p428 = scmp.lt.s32.totalorder %s19, 1
        %s429 = scalar_select %p428, %s19, 1
        %p430 = scmp.lt.s32.totalorder %s20, 0
        %s431 = scalar_select %p430, %s20, 0
        %s432 = sadd.s32 %s431, %s429
        %s433 = smul.addr %s432, 8
        %s434 = scalar_lea.vmem %s2, %s433
      $region40: #{tpu_custom_call.1} parent=35 // pred_fallthru
        _
    $region36: #{tpu_custom_call.1} parent=5 // pred_fallthru
      _
  $region6: #{tpu_custom_call.1} parent=0 // loop_footer
    %s12 = sadd.s32 1, %s8
  $region7: #{tpu_custom_call.1} parent=0 // loop_footer_branch
    %7 = sbr.rel target = $region3
  $region8: #{tpu_custom_call.1} parent=0 // loop_exit
    _

</llo_original>
